<compile_context>
chip_gen: v7x
topology: tpu7x:2x2x1
jax: 0.10.0
libtpu: 0.0.40
codegen_flags: <defaults>
</compile_context>

<pallas_src>
import numpy as np
import jax
import jax.numpy as jnp
from jax.experimental import pallas as pl
from jax.experimental.pallas import tpu as pltpu

# ---------------- problem sizes (small, synthetic) ----------------
N = 2                     # batch
C_STREAM = 128            # channels per backbone stream (stand-in for 1024/1280/2048)
C_FEAT = 2 * C_STREAM     # concatenated feature channels ("n_features")
HF = WF = 8               # backbone feature-map spatial size
P = HF * WF               # pixels per feature map
HIDDEN = 64               # neural-conv0 output channels (exact from module)
SCALE = 16                # nn.Upsample(scale_factor=16)
HOUT, WOUT = HF * SCALE, WF * SCALE
BN_EPS = 1e-5

# Offsets into the packed per-channel parameter vector: [bn0_scale; bn0_shift; bn1_shift; w1]
OFF_BN0S = 0
OFF_BN0B = C_FEAT
OFF_B1 = 2 * C_FEAT
OFF_W1 = 2 * C_FEAT + HIDDEN
PVEC_LEN = 2 * C_FEAT + 2 * HIDDEN          # 640 (all slice starts are multiples of 8)


# ---------------- fused Pallas kernel (single invocation, whole batch) ----------------
def fused_head_upsample_kernel(x_ref, pvec_ref, w0t_ref, ubd_ref, uct_ref, o_ref):
    """BN0 -> ReLU -> conv0(1x1) -> BN1 -> ReLU -> conv1(1x1) -> bilinear x16, all batches.

    x_ref   : (C_FEAT, N*P)      channel-major concat(color, depth) features, lane-dense
    pvec_ref: (PVEC_LEN, 1)      packed [bn0_scale; bn0_shift; bn1_shift; conv1_weight]
    w0t_ref : (HIDDEN, C_FEAT)   conv0 weight^T with BN1 scale folded into its rows
    ubd_ref : (N*HOUT, N*P)      block-diagonal stack of the row-interp matrix B
    uct_ref : (N*P, WOUT)        column-interp matrix C tiled N times along rows
    o_ref   : (N*HOUT, WOUT)     stacked upsampled q-maps (batch blocks along sublanes)
    """
    x = x_ref[...]                                                    # (C_FEAT, N*P)
    bn0s = pvec_ref[OFF_BN0S:OFF_BN0S + C_FEAT, :]                    # (C_FEAT, 1)
    bn0b = pvec_ref[OFF_BN0B:OFF_BN0B + C_FEAT, :]                    # (C_FEAT, 1)
    b1 = pvec_ref[OFF_B1:OFF_B1 + HIDDEN, :]                          # (HIDDEN, 1)
    w1 = pvec_ref[OFF_W1:OFF_W1 + HIDDEN, :]                          # (HIDDEN, 1)

    # BN0 + ReLU (per-channel affine, full 128-lane VPU ops).
    x = jnp.maximum(x * bn0s + bn0b, 0.0)

    # conv0 (1x1, C_FEAT -> 64): single K=256 MXU pass, BN1 scale pre-folded into w0t.
    h = jnp.dot(w0t_ref[...], x, preferred_element_type=jnp.float32)  # (HIDDEN, N*P)

    # BN1 shift + ReLU.
    h = jnp.maximum(h + b1, 0.0)

    # conv1 (1x1, 64 -> 1): sublane reduction (XLU slot) -> lane-dense (1, N*P) row.
    q = jnp.sum(h * w1, axis=0, keepdims=True)                        # (1, N*P)

    # Bilinear x16 (align_corners=True) for all batches in ONE stacked matmul:
    # out[n*HOUT+i, j] = sum_p B[i,p] * q[n*P+p] * C[p,j]
    o_ref[...] = jnp.dot(ubd_ref[...] * q, uct_ref[...],
                         preferred_element_type=jnp.float32)          # (N*HOUT, WOUT)


# ---------------- wrapper ----------------
def forward(color_features, depth_features, params):
    """color/depth features: (N, C_STREAM, HF, WF) NCHW -> q_values (N, 1, HOUT, WOUT)."""
    n = color_features.shape[0]
    # One-time wrapper-side relayout (~128 KiB): concat the two streams along channels
    # and put all batch pixels on lanes -> (C_FEAT, N*P) = (256, 128), fully lane-dense.
    xc = color_features.reshape(n, C_STREAM, P)
    xd = depth_features.reshape(n, C_STREAM, P)
    x = jnp.concatenate([xc, xd], axis=1)                             # (N, C_FEAT, P)
    x = jnp.transpose(x, (1, 0, 2)).reshape(C_FEAT, n * P)            # (C_FEAT, N*P)

    vmem = pltpu.MemorySpace.VMEM
    out = pl.pallas_call(
        fused_head_upsample_kernel,
        out_shape=jax.ShapeDtypeStruct((n * HOUT, WOUT), jnp.float32),
        in_specs=[
            pl.BlockSpec(memory_space=vmem),   # x         (C_FEAT, N*P)
            pl.BlockSpec(memory_space=vmem),   # pvec      (PVEC_LEN, 1)
            pl.BlockSpec(memory_space=vmem),   # w0t_fold  (HIDDEN, C_FEAT)
            pl.BlockSpec(memory_space=vmem),   # ub_bd     (N*HOUT, N*P)
            pl.BlockSpec(memory_space=vmem),   # uc_tiled  (N*P, WOUT)
        ],
        out_specs=pl.BlockSpec(memory_space=vmem),
    )(x, params["pvec"], params["w0t_fold"], params["ub_bd"], params["uc_tiled"])
    # Batch blocks are stacked along rows -> free reshape back to NCHW.
    return out.reshape(n, 1, HOUT, WOUT)


# ---------------- deterministic parameter / input setup ----------------
def bilinear_matrix(in_size, out_size):
    """nn.Upsample(mode='bilinear', align_corners=True) interpolation matrix."""
    src = np.arange(out_size, dtype=np.float64) * (in_size - 1) / (out_size - 1)
    lo = np.clip(np.floor(src).astype(np.int64), 0, in_size - 2)
    frac = (src - lo).astype(np.float32)
    m = np.zeros((out_size, in_size), np.float32)
    m[np.arange(out_size), lo] = 1.0 - frac
    m[np.arange(out_size), lo + 1] = frac
    return m


def bn_affine(gamma, beta, mean, var, eps=BN_EPS):
    """BatchNorm2d (eval) as per-channel affine y = scale*x + shift (general trained-stats form)."""
    scale = gamma / np.sqrt(var + eps)
    shift = beta - mean * scale
    return scale.astype(np.float32), shift.astype(np.float32)


def make_params(key):
    k0, k1 = jax.random.split(key)
    # kaiming_normal_ (fan_in, gain=sqrt(2)) for the two 1x1 conv weights (bias=False).
    w0 = jax.random.normal(k0, (HIDDEN, C_FEAT), jnp.float32) * np.float32(
        np.sqrt(2.0 / C_FEAT))                 # torch weight (64, C_FEAT, 1, 1) -> (64, C_FEAT)
    w1 = jax.random.normal(k1, (HIDDEN,), jnp.float32) * np.float32(
        np.sqrt(2.0 / HIDDEN))                 # torch weight (1, 64, 1, 1) -> (64,)

    # BatchNorm2d eval statistics at module init (gamma=1, beta=0, mean=0, var=1),
    # folded with the general formula so real trained stats would also be handled.
    bn0_scale, bn0_shift = bn_affine(np.ones(C_FEAT, np.float32), np.zeros(C_FEAT, np.float32),
                                     np.zeros(C_FEAT, np.float32), np.ones(C_FEAT, np.float32))
    bn1_scale, bn1_shift = bn_affine(np.ones(HIDDEN, np.float32), np.zeros(HIDDEN, np.float32),
                                     np.zeros(HIDDEN, np.float32), np.ones(HIDDEN, np.float32))

    # Fold BN1 *scale* into the conv0 weight rows; BN1 *shift* stays as a post-conv0 bias.
    w0t_fold = jnp.asarray(bn1_scale[:, None]) * w0                   # (HIDDEN, C_FEAT)

    # Packed per-channel parameter vector: one DMA instead of four tiny ones.
    pvec = np.concatenate([bn0_scale, bn0_shift, bn1_shift,
                           np.asarray(w1)]).astype(np.float32)[:, None]  # (PVEC_LEN, 1)

    # Bilinear x16 (align_corners=True) matrices, pre-flattened for the kernel.
    uh = bilinear_matrix(HF, HOUT)                  # (HOUT, HF)
    uw = bilinear_matrix(WF, WOUT).T                # (WF, WOUT)
    up_b = np.repeat(uh, WF, axis=1)                # (HOUT, P):  B[i, h*WF+w] = Uh[i, h]
    up_c = np.tile(uw, (HF, 1))                     # (P, WOUT):  C[h*WF+w, j] = Uw[w, j]
    # Batched forms: block-diagonal B-stack (N*HOUT, N*P) and C tiled along rows (N*P, WOUT).
    ub_bd = np.zeros((N * HOUT, N * P), np.float32)
    for b in range(N):
        ub_bd[b * HOUT:(b + 1) * HOUT, b * P:(b + 1) * P] = up_b
    uc_tiled = np.tile(up_c, (N, 1))

    return dict(
        # kernel-side
        pvec=jnp.asarray(pvec),
        w0t_fold=w0t_fold,
        ub_bd=jnp.asarray(ub_bd),
        uc_tiled=jnp.asarray(uc_tiled),
        # raw parameters for the pure-JAX reference
        w0_raw=w0, w1_raw=w1,
        bn0_scale_raw=jnp.asarray(bn0_scale), bn0_shift_raw=jnp.asarray(bn0_shift),
        bn1_scale_raw=jnp.asarray(bn1_scale), bn1_shift_raw=jnp.asarray(bn1_shift),
        uh_raw=jnp.asarray(uh), uw_raw=jnp.asarray(uw),
    )


def reference_forward(color_features, depth_features, p):
    feats = jnp.concatenate([color_features, depth_features], axis=1)  # (N, C_FEAT, HF, WF)
    h = jnp.maximum(feats * p["bn0_scale_raw"][None, :, None, None]
                    + p["bn0_shift_raw"][None, :, None, None], 0.0)
    h = jnp.einsum("nchw,kc->nkhw", h, p["w0_raw"])
    h = jnp.maximum(h * p["bn1_scale_raw"][None, :, None, None]
                    + p["bn1_shift_raw"][None, :, None, None], 0.0)
    q = jnp.einsum("nkhw,k->nhw", h, p["w1_raw"])
    out = jnp.einsum("oh,nhw,wj->noj", p["uh_raw"], q, p["uw_raw"])
    return out[:, None, :, :]


if __name__ == "__main__":
    key = jax.random.PRNGKey(0)
    kp, kc, kd = jax.random.split(key, 3)
    params = make_params(kp)
    color_feat = jax.random.normal(kc, (N, C_STREAM, HF, WF), jnp.float32)
    depth_feat = jax.random.normal(kd, (N, C_STREAM, HF, WF), jnp.float32)

    q_values = forward(color_feat, depth_feat, params)
    jax.block_until_ready(q_values)

    ref = reference_forward(color_feat, depth_feat, params)
    assert q_values.shape == (N, 1, HOUT, WOUT)
    np.testing.assert_allclose(np.asarray(q_values), np.asarray(ref),
                               rtol=1e-4, atol=1e-4)
    print("KERNEL_OK")
</pallas_src>

<mosaic_0001>
module attributes {stable_mosaic.version = 11 : i64} {
  func.func @fused_head_upsample_kernel(%arg0: memref<256x128xf32, #tpu.memory_space<vmem>>, %arg1: memref<640x1xf32, #tpu.memory_space<vmem>>, %arg2: memref<64x256xf32, #tpu.memory_space<vmem>>, %arg3: memref<256x128xf32, #tpu.memory_space<vmem>>, %arg4: memref<128x128xf32, #tpu.memory_space<vmem>>, %arg5: memref<256x128xf32, #tpu.memory_space<vmem>>) attributes {dimension_semantics = [], scalar_prefetch = 0 : i64, scratch_operands = 0 : i64, tpu.core_type = #tpu.core_type<tc>} {
    %c0 = arith.constant 0 : index
    %c0_0 = arith.constant 0 : index
    %0 = vector.load %arg0[%c0, %c0_0] : memref<256x128xf32, #tpu.memory_space<vmem>>, vector<256x128xf32>
    %c0_1 = arith.constant 0 : index
    %c0_2 = arith.constant 0 : index
    %1 = vector.load %arg1[%c0_1, %c0_2] : memref<640x1xf32, #tpu.memory_space<vmem>>, vector<256x1xf32>
    %c256 = arith.constant 256 : index
    %c0_3 = arith.constant 0 : index
    %2 = vector.load %arg1[%c256, %c0_3] : memref<640x1xf32, #tpu.memory_space<vmem>>, vector<256x1xf32>
    %c512 = arith.constant 512 : index
    %c0_4 = arith.constant 0 : index
    %3 = vector.load %arg1[%c512, %c0_4] : memref<640x1xf32, #tpu.memory_space<vmem>>, vector<64x1xf32>
    %c576 = arith.constant 576 : index
    %c0_5 = arith.constant 0 : index
    %4 = vector.load %arg1[%c576, %c0_5] : memref<640x1xf32, #tpu.memory_space<vmem>>, vector<64x1xf32>
    %5 = vector.broadcast %1 : vector<256x1xf32> to vector<256x128xf32>
    %6 = arith.mulf %0, %5 : vector<256x128xf32>
    %7 = vector.broadcast %2 : vector<256x1xf32> to vector<256x128xf32>
    %8 = arith.addf %6, %7 : vector<256x128xf32>
    %cst = arith.constant 0.000000e+00 : f32
    %9 = vector.broadcast %cst : f32 to vector<256x128xf32>
    %10 = arith.maximumf %8, %9 : vector<256x128xf32>
    %c0_6 = arith.constant 0 : index
    %c0_7 = arith.constant 0 : index
    %11 = vector.load %arg2[%c0_6, %c0_7] : memref<64x256xf32, #tpu.memory_space<vmem>>, vector<64x256xf32>
    %cst_8 = arith.constant dense<0.000000e+00> : vector<64x128xf32>
    %12 = tpu.matmul %11, %10, %cst_8 {dimension_numbers = #tpu.dot_dimension_numbers<[1], [0], [0], [1], [0, 0, 1, 1], [], []>} : vector<64x256xf32>, vector<256x128xf32>, vector<64x128xf32> -> vector<64x128xf32>
    %13 = vector.broadcast %3 : vector<64x1xf32> to vector<64x128xf32>
    %14 = arith.addf %12, %13 : vector<64x128xf32>
    %cst_9 = arith.constant 0.000000e+00 : f32
    %15 = vector.broadcast %cst_9 : f32 to vector<64x128xf32>
    %16 = arith.maximumf %14, %15 : vector<64x128xf32>
    %17 = vector.broadcast %4 : vector<64x1xf32> to vector<64x128xf32>
    %18 = arith.mulf %16, %17 : vector<64x128xf32>
    %cst_10 = arith.constant dense<0.000000e+00> : vector<128xf32>
    %19 = vector.multi_reduction <add>, %18, %cst_10 [0] : vector<64x128xf32> to vector<128xf32>
    %20 = vector.shape_cast %19 : vector<128xf32> to vector<1x128xf32>
    %c0_11 = arith.constant 0 : index
    %c0_12 = arith.constant 0 : index
    %21 = vector.load %arg3[%c0_11, %c0_12] : memref<256x128xf32, #tpu.memory_space<vmem>>, vector<256x128xf32>
    %22 = vector.broadcast %20 : vector<1x128xf32> to vector<256x128xf32>
    %23 = arith.mulf %21, %22 : vector<256x128xf32>
    %c0_13 = arith.constant 0 : index
    %c0_14 = arith.constant 0 : index
    %24 = vector.load %arg4[%c0_13, %c0_14] : memref<128x128xf32, #tpu.memory_space<vmem>>, vector<128x128xf32>
    %cst_15 = arith.constant dense<0.000000e+00> : vector<256x128xf32>
    %25 = tpu.matmul %23, %24, %cst_15 {dimension_numbers = #tpu.dot_dimension_numbers<[1], [0], [0], [1], [0, 0, 1, 1], [], []>} : vector<256x128xf32>, vector<128x128xf32>, vector<256x128xf32> -> vector<256x128xf32>
    %c0_16 = arith.constant 0 : index
    %c0_17 = arith.constant 0 : index
    %26 = vector.load %arg5[%c0_16, %c0_17] : memref<256x128xf32, #tpu.memory_space<vmem>>, vector<256x128xf32>
    tpu.vector_store %arg5[%c0_16, %c0_17], %25 {strides = array<i32>} : memref<256x128xf32, #tpu.memory_space<vmem>>, vector<256x128xf32>,
    return
  }
}

</mosaic_0001>

<llo_original>
// kernel: tpu_custom_call.1
$region0: #{tpu_custom_call.1}
  #allocation0 [shape = 'u32[]', space=smem, size = 0x4, offset = 0x4, fixed_abs, tag = 'smem constant byte address 0x4 - core index']
  #allocation1 [shape = 'u32[144,128]{1,0:T(1,128)}', space=vmem, size = 0x12000, scoped, tag = 'internal scratch']
  %s0 = inlined_call_operand.vmem [shape: f32[256,128], index: 0, kind: input, shape index: {}]
  %s1 = inlined_call_operand.vmem [shape: f32[640,1], index: 1, kind: input, shape index: {}]
  %s2 = inlined_call_operand.vmem [shape: f32[64,256], index: 2, kind: input, shape index: {}]
  %s3 = inlined_call_operand.vmem [shape: f32[256,128], index: 3, kind: input, shape index: {}]
  %s4 = inlined_call_operand.hbm [shape: f32[128,128], index: 4, kind: input, shape index: {}]
  %s5 = inlined_call_operand.hbm [shape: f32[256,128], index: 5, kind: output, shape index: {}]
  %s6 = sld [smem:[#allocation0]]
  $region34: #{tpu_custom_call.1} parent=0
    _
  %s8 = ssub.s32 1, %s6
  %s9 = scalar_select 0, %s8, %s6
  $region1: #{tpu_custom_call.1} parent=0
    #allocation2 [shape = 'u8[65536]{0}', space=vmem, size = 0x10000, scoped, tag = 'input window, operand 4, single buffered']
    #allocation3 [shape = 's32[1]{0}', space=sflag, size = 0x4, scoped, tag = 'scoped memory for tpu_custom_call.1']
    #allocation4 [shape = 's32[1]{0}', space=sflag, size = 0x4, scoped, tag = 'scoped memory for tpu_custom_call.1']
    #allocation5 [shape = 'u8[131072]{0}', space=vmem, size = 0x20000, scoped, tag = 'output window, operand 0, single buffered']
    %10 = vsyncpa [#allocation3], 0
    %11 = vsyncpa [#allocation4], 0
    // Predicated region
    $region2: #{tpu_custom_call.1} parent=1 // pred_check
      _
    $region3: #{tpu_custom_call.1} parent=1 // pred_check_branch
      %13 = sbr.rel (0) target = $region5
    $region4: #{tpu_custom_call.1} parent=1 // pred_region
      _
    $region5: #{tpu_custom_call.1} parent=1 // pred_fallthru
      _
    // Predicated region
    $region6: #{tpu_custom_call.1} parent=1 // pred_check
      _
    $region7: #{tpu_custom_call.1} parent=1 // pred_check_branch
      %15 = sbr.rel (0) target = $region9
    $region8: #{tpu_custom_call.1} parent=1 // pred_region
      _
    $region9: #{tpu_custom_call.1} parent=1 // pred_fallthru
      _
    // Predicated region
    $region10: #{tpu_custom_call.1} parent=1 // pred_check
      _
    $region11: #{tpu_custom_call.1} parent=1 // pred_check_branch
      %17 = sbr.rel (0) target = $region13
    $region12: #{tpu_custom_call.1} parent=1 // pred_region
      _
    $region13: #{tpu_custom_call.1} parent=1 // pred_fallthru
      _
    // Predicated region
    $region14: #{tpu_custom_call.1} parent=1 // pred_check
      _
    $region15: #{tpu_custom_call.1} parent=1 // pred_check_branch
      %19 = sbr.rel (0) target = $region17
    $region16: #{tpu_custom_call.1} parent=1 // pred_region
      _
    $region17: #{tpu_custom_call.1} parent=1 // pred_fallthru
      _
    // Predicated region
    $region18: #{tpu_custom_call.1} parent=1 // pred_check
      _
    $region19: #{tpu_custom_call.1} parent=1 // pred_check_branch
      %21 = sbr.rel (0) target = $region21
    $region20: #{tpu_custom_call.1} parent=1 // pred_region
      %s23 = ssub.s32 2048, 2048
      %24 = vsyncadd [#allocation3], %s23
      %s25 = sshll.u32 [#allocation2], 4
      %s26 = int_to_ptr.vmem [resolvable:$true] %s25
      %31 = dma.hbm_to_vmem [thread:$0]  %s4, 2048, %s26, [#allocation3], 128, 128, 8
    $region21: #{tpu_custom_call.1} parent=1 // pred_fallthru
      _
    // Predicated region
    $region22: #{tpu_custom_call.1} parent=1 // pred_check
      _
    $region23: #{tpu_custom_call.1} parent=1 // pred_check_branch
      %33 = sbr.rel (0) target = $region25
    $region24: #{tpu_custom_call.1} parent=1 // pred_region
      %34 = dma.done [#allocation3], 2048
    $region25: #{tpu_custom_call.1} parent=1 // pred_fallthru
      _
    %v35 = vld [vmem:[%s0] sm:$0xff]
    %v36 = vld [vmem:[%s0 + $0x8] sm:$0xff]
    %v37 = vld [vmem:[%s0 + $0x10] sm:$0xff]
    %v38 = vld [vmem:[%s0 + $0x18] sm:$0xff]
    %v39 = vld [vmem:[%s0 + $0x20] sm:$0xff]
    %v40 = vld [vmem:[%s0 + $0x28] sm:$0xff]
    %v41 = vld [vmem:[%s0 + $0x30] sm:$0xff]
    %v42 = vld [vmem:[%s0 + $0x38] sm:$0xff]
    %v43 = vld [vmem:[%s0 + $0x40] sm:$0xff]
    %v44 = vld [vmem:[%s0 + $0x48] sm:$0xff]
    %v45 = vld [vmem:[%s0 + $0x50] sm:$0xff]
    %v46 = vld [vmem:[%s0 + $0x58] sm:$0xff]
    %v47 = vld [vmem:[%s0 + $0x60] sm:$0xff]
    %v48 = vld [vmem:[%s0 + $0x68] sm:$0xff]
    %v49 = vld [vmem:[%s0 + $0x70] sm:$0xff]
    %v50 = vld [vmem:[%s0 + $0x78] sm:$0xff]
    %v51 = vld [vmem:[%s0 + $0x80] sm:$0xff]
    %v52 = vld [vmem:[%s0 + $0x88] sm:$0xff]
    %v53 = vld [vmem:[%s0 + $0x90] sm:$0xff]
    %v54 = vld [vmem:[%s0 + $0x98] sm:$0xff]
    %v55 = vld [vmem:[%s0 + $0xa0] sm:$0xff]
    %v56 = vld [vmem:[%s0 + $0xa8] sm:$0xff]
    %v57 = vld [vmem:[%s0 + $0xb0] sm:$0xff]
    %v58 = vld [vmem:[%s0 + $0xb8] sm:$0xff]
    %v59 = vld [vmem:[%s0 + $0xc0] sm:$0xff]
    %v60 = vld [vmem:[%s0 + $0xc8] sm:$0xff]
    %v61 = vld [vmem:[%s0 + $0xd0] sm:$0xff]
    %v62 = vld [vmem:[%s0 + $0xd8] sm:$0xff]
    %v63 = vld [vmem:[%s0 + $0xe0] sm:$0xff]
    %v64 = vld [vmem:[%s0 + $0xe8] sm:$0xff]
    %v65 = vld [vmem:[%s0 + $0xf0] sm:$0xff]
    %v66 = vld [vmem:[%s0 + $0xf8] sm:$0xff]
    %v67 = vld [vmem:[%s1] sm:$0xff]
    %v68 = vld [vmem:[%s1 + $0x8] sm:$0xff]
    %v69 = vld [vmem:[%s1 + $0x10] sm:$0xff]
    %v70 = vld [vmem:[%s1 + $0x18] sm:$0xff]
    %v71 = vld [vmem:[%s1 + $0x20] sm:$0xff]
    %v72 = vld [vmem:[%s1 + $0x28] sm:$0xff]
    %v73 = vld [vmem:[%s1 + $0x30] sm:$0xff]
    %v74 = vld [vmem:[%s1 + $0x38] sm:$0xff]
    %v75 = vld [vmem:[%s1 + $0x40] sm:$0xff]
    %v76 = vld [vmem:[%s1 + $0x48] sm:$0xff]
    %v77 = vld [vmem:[%s1 + $0x50] sm:$0xff]
    %v78 = vld [vmem:[%s1 + $0x58] sm:$0xff]
    %v79 = vld [vmem:[%s1 + $0x60] sm:$0xff]
    %v80 = vld [vmem:[%s1 + $0x68] sm:$0xff]
    %v81 = vld [vmem:[%s1 + $0x70] sm:$0xff]
    %v82 = vld [vmem:[%s1 + $0x78] sm:$0xff]
    %v83 = vld [vmem:[%s1 + $0x80] sm:$0xff]
    %v84 = vld [vmem:[%s1 + $0x88] sm:$0xff]
    %v85 = vld [vmem:[%s1 + $0x90] sm:$0xff]
    %v86 = vld [vmem:[%s1 + $0x98] sm:$0xff]
    %v87 = vld [vmem:[%s1 + $0xa0] sm:$0xff]
    %v88 = vld [vmem:[%s1 + $0xa8] sm:$0xff]
    %v89 = vld [vmem:[%s1 + $0xb0] sm:$0xff]
    %v90 = vld [vmem:[%s1 + $0xb8] sm:$0xff]
    %v91 = vld [vmem:[%s1 + $0xc0] sm:$0xff]
    %v92 = vld [vmem:[%s1 + $0xc8] sm:$0xff]
    %v93 = vld [vmem:[%s1 + $0xd0] sm:$0xff]
    %v94 = vld [vmem:[%s1 + $0xd8] sm:$0xff]
    %v95 = vld [vmem:[%s1 + $0xe0] sm:$0xff]
    %v96 = vld [vmem:[%s1 + $0xe8] sm:$0xff]
    %v97 = vld [vmem:[%s1 + $0xf0] sm:$0xff]
    %v98 = vld [vmem:[%s1 + $0xf8] sm:$0xff]
    %v99 = vld [vmem:[%s1 + $0x100] sm:$0xff]
    %v100 = vld [vmem:[%s1 + $0x108] sm:$0xff]
    %v101 = vld [vmem:[%s1 + $0x110] sm:$0xff]
    %v102 = vld [vmem:[%s1 + $0x118] sm:$0xff]
    %v103 = vld [vmem:[%s1 + $0x120] sm:$0xff]
    %v104 = vld [vmem:[%s1 + $0x128] sm:$0xff]
    %v105 = vld [vmem:[%s1 + $0x130] sm:$0xff]
    %v106 = vld [vmem:[%s1 + $0x138] sm:$0xff]
    %v107 = vld [vmem:[%s1 + $0x140] sm:$0xff]
    %v108 = vld [vmem:[%s1 + $0x148] sm:$0xff]
    %v109 = vld [vmem:[%s1 + $0x150] sm:$0xff]
    %v110 = vld [vmem:[%s1 + $0x158] sm:$0xff]
    %v111 = vld [vmem:[%s1 + $0x160] sm:$0xff]
    %v112 = vld [vmem:[%s1 + $0x168] sm:$0xff]
    %v113 = vld [vmem:[%s1 + $0x170] sm:$0xff]
    %v114 = vld [vmem:[%s1 + $0x178] sm:$0xff]
    %v115 = vld [vmem:[%s1 + $0x180] sm:$0xff]
    %v116 = vld [vmem:[%s1 + $0x188] sm:$0xff]
    %v117 = vld [vmem:[%s1 + $0x190] sm:$0xff]
    %v118 = vld [vmem:[%s1 + $0x198] sm:$0xff]
    %v119 = vld [vmem:[%s1 + $0x1a0] sm:$0xff]
    %v120 = vld [vmem:[%s1 + $0x1a8] sm:$0xff]
    %v121 = vld [vmem:[%s1 + $0x1b0] sm:$0xff]
    %v122 = vld [vmem:[%s1 + $0x1b8] sm:$0xff]
    %v123 = vld [vmem:[%s1 + $0x1c0] sm:$0xff]
    %v124 = vld [vmem:[%s1 + $0x1c8] sm:$0xff]
    %v125 = vld [vmem:[%s1 + $0x1d0] sm:$0xff]
    %v126 = vld [vmem:[%s1 + $0x1d8] sm:$0xff]
    %v127 = vld [vmem:[%s1 + $0x1e0] sm:$0xff]
    %v128 = vld [vmem:[%s1 + $0x1e8] sm:$0xff]
    %v129 = vld [vmem:[%s1 + $0x1f0] sm:$0xff]
    %v130 = vld [vmem:[%s1 + $0x1f8] sm:$0xff]
    %v131 = vld [vmem:[%s1 + $0x200] sm:$0xff]
    %v132 = vld [vmem:[%s1 + $0x208] sm:$0xff]
    %v133 = vld [vmem:[%s1 + $0x210] sm:$0xff]
    %v134 = vld [vmem:[%s1 + $0x218] sm:$0xff]
    %v135 = vld [vmem:[%s1 + $0x220] sm:$0xff]
    %v136 = vld [vmem:[%s1 + $0x228] sm:$0xff]
    %v137 = vld [vmem:[%s1 + $0x230] sm:$0xff]
    %v138 = vld [vmem:[%s1 + $0x238] sm:$0xff]
    %v139 = vld [vmem:[%s1 + $0x240] sm:$0xff]
    %v140 = vld [vmem:[%s1 + $0x248] sm:$0xff]
    %v141 = vld [vmem:[%s1 + $0x250] sm:$0xff]
    %v142 = vld [vmem:[%s1 + $0x258] sm:$0xff]
    %v143 = vld [vmem:[%s1 + $0x260] sm:$0xff]
    %v144 = vld [vmem:[%s1 + $0x268] sm:$0xff]
    %v145 = vld [vmem:[%s1 + $0x270] sm:$0xff]
    %v146 = vld [vmem:[%s1 + $0x278] sm:$0xff]
    %148 = vset.pattern.permute.xlu0 0
    %149 = vperm.xlu0 %148, %v67
    %v150 = vpop.permute.xlu0 %149
    %153 = vset.pattern.permute.xlu0 0
    %154 = vperm.xlu0 %153, %v68
    %v155 = vpop.permute.xlu0 %154
    %158 = vset.pattern.permute.xlu0 0
    %159 = vperm.xlu0 %158, %v69
    %v160 = vpop.permute.xlu0 %159
    %163 = vset.pattern.permute.xlu0 0
    %164 = vperm.xlu0 %163, %v70
    %v165 = vpop.permute.xlu0 %164
    %168 = vset.pattern.permute.xlu0 0
    %169 = vperm.xlu0 %168, %v71
    %v170 = vpop.permute.xlu0 %169
    %173 = vset.pattern.permute.xlu0 0
    %174 = vperm.xlu0 %173, %v72
    %v175 = vpop.permute.xlu0 %174
    %178 = vset.pattern.permute.xlu0 0
    %179 = vperm.xlu0 %178, %v73
    %v180 = vpop.permute.xlu0 %179
    %183 = vset.pattern.permute.xlu0 0
    %184 = vperm.xlu0 %183, %v74
    %v185 = vpop.permute.xlu0 %184
    %188 = vset.pattern.permute.xlu0 0
    %189 = vperm.xlu0 %188, %v75
    %v190 = vpop.permute.xlu0 %189
    %193 = vset.pattern.permute.xlu0 0
    %194 = vperm.xlu0 %193, %v76
    %v195 = vpop.permute.xlu0 %194
    %198 = vset.pattern.permute.xlu0 0
    %199 = vperm.xlu0 %198, %v77
    %v200 = vpop.permute.xlu0 %199
    %203 = vset.pattern.permute.xlu0 0
    %204 = vperm.xlu0 %203, %v78
    %v205 = vpop.permute.xlu0 %204
    %208 = vset.pattern.permute.xlu0 0
    %209 = vperm.xlu0 %208, %v79
    %v210 = vpop.permute.xlu0 %209
    %213 = vset.pattern.permute.xlu0 0
    %214 = vperm.xlu0 %213, %v80
    %v215 = vpop.permute.xlu0 %214
    %218 = vset.pattern.permute.xlu0 0
    %219 = vperm.xlu0 %218, %v81
    %v220 = vpop.permute.xlu0 %219
    %223 = vset.pattern.permute.xlu0 0
    %224 = vperm.xlu0 %223, %v82
    %v225 = vpop.permute.xlu0 %224
    %228 = vset.pattern.permute.xlu0 0
    %229 = vperm.xlu0 %228, %v83
    %v230 = vpop.permute.xlu0 %229
    %233 = vset.pattern.permute.xlu0 0
    %234 = vperm.xlu0 %233, %v84
    %v235 = vpop.permute.xlu0 %234
    %238 = vset.pattern.permute.xlu0 0
    %239 = vperm.xlu0 %238, %v85
    %v240 = vpop.permute.xlu0 %239
    %243 = vset.pattern.permute.xlu0 0
    %244 = vperm.xlu0 %243, %v86
    %v245 = vpop.permute.xlu0 %244
    %248 = vset.pattern.permute.xlu0 0
    %249 = vperm.xlu0 %248, %v87
    %v250 = vpop.permute.xlu0 %249
    %253 = vset.pattern.permute.xlu0 0
    %254 = vperm.xlu0 %253, %v88
    %v255 = vpop.permute.xlu0 %254
    %258 = vset.pattern.permute.xlu0 0
    %259 = vperm.xlu0 %258, %v89
    %v260 = vpop.permute.xlu0 %259
    %263 = vset.pattern.permute.xlu0 0
    %264 = vperm.xlu0 %263, %v90
    %v265 = vpop.permute.xlu0 %264
    %268 = vset.pattern.permute.xlu0 0
    %269 = vperm.xlu0 %268, %v91
    %v270 = vpop.permute.xlu0 %269
    %273 = vset.pattern.permute.xlu0 0
    %274 = vperm.xlu0 %273, %v92
    %v275 = vpop.permute.xlu0 %274
    %278 = vset.pattern.permute.xlu0 0
    %279 = vperm.xlu0 %278, %v93
    %v280 = vpop.permute.xlu0 %279
    %283 = vset.pattern.permute.xlu0 0
    %284 = vperm.xlu0 %283, %v94
    %v285 = vpop.permute.xlu0 %284
    %288 = vset.pattern.permute.xlu0 0
    %289 = vperm.xlu0 %288, %v95
    %v290 = vpop.permute.xlu0 %289
    %293 = vset.pattern.permute.xlu0 0
    %294 = vperm.xlu0 %293, %v96
    %v295 = vpop.permute.xlu0 %294
    %298 = vset.pattern.permute.xlu0 0
    %299 = vperm.xlu0 %298, %v97
    %v300 = vpop.permute.xlu0 %299
    %303 = vset.pattern.permute.xlu0 0
    %304 = vperm.xlu0 %303, %v98
    %v305 = vpop.permute.xlu0 %304
    %v307 = vmul.f32 %v35, %v150
    %v308 = vmul.f32 %v36, %v155
    %v309 = vmul.f32 %v37, %v160
    %v310 = vmul.f32 %v38, %v165
    %v311 = vmul.f32 %v39, %v170
    %v312 = vmul.f32 %v40, %v175
    %v313 = vmul.f32 %v41, %v180
    %v314 = vmul.f32 %v42, %v185
    %v315 = vmul.f32 %v43, %v190
    %v316 = vmul.f32 %v44, %v195
    %v317 = vmul.f32 %v45, %v200
    %v318 = vmul.f32 %v46, %v205
    %v319 = vmul.f32 %v47, %v210
    %v320 = vmul.f32 %v48, %v215
    %v321 = vmul.f32 %v49, %v220
    %v322 = vmul.f32 %v50, %v225
    %v323 = vmul.f32 %v51, %v230
    %v324 = vmul.f32 %v52, %v235
    %v325 = vmul.f32 %v53, %v240
    %v326 = vmul.f32 %v54, %v245
    %v327 = vmul.f32 %v55, %v250
    %v328 = vmul.f32 %v56, %v255
    %v329 = vmul.f32 %v57, %v260
    %v330 = vmul.f32 %v58, %v265
    %v331 = vmul.f32 %v59, %v270
    %v332 = vmul.f32 %v60, %v275
    %v333 = vmul.f32 %v61, %v280
    %v334 = vmul.f32 %v62, %v285
    %v335 = vmul.f32 %v63, %v290
    %v336 = vmul.f32 %v64, %v295
    %v337 = vmul.f32 %v65, %v300
    %v338 = vmul.f32 %v66, %v305
    %340 = vset.pattern.permute.xlu0 0
    %341 = vperm.xlu0 %340, %v99
    %v342 = vpop.permute.xlu0 %341
    %345 = vset.pattern.permute.xlu0 0
    %346 = vperm.xlu0 %345, %v100
    %v347 = vpop.permute.xlu0 %346
    %350 = vset.pattern.permute.xlu0 0
    %351 = vperm.xlu0 %350, %v101
    %v352 = vpop.permute.xlu0 %351
    %355 = vset.pattern.permute.xlu0 0
    %356 = vperm.xlu0 %355, %v102
    %v357 = vpop.permute.xlu0 %356
    %360 = vset.pattern.permute.xlu0 0
    %361 = vperm.xlu0 %360, %v103
    %v362 = vpop.permute.xlu0 %361
    %365 = vset.pattern.permute.xlu0 0
    %366 = vperm.xlu0 %365, %v104
    %v367 = vpop.permute.xlu0 %366
    %370 = vset.pattern.permute.xlu0 0
    %371 = vperm.xlu0 %370, %v105
    %v372 = vpop.permute.xlu0 %371
    %375 = vset.pattern.permute.xlu0 0
    %376 = vperm.xlu0 %375, %v106
    %v377 = vpop.permute.xlu0 %376
    %380 = vset.pattern.permute.xlu0 0
    %381 = vperm.xlu0 %380, %v107
    %v382 = vpop.permute.xlu0 %381
    %385 = vset.pattern.permute.xlu0 0
    %386 = vperm.xlu0 %385, %v108
    %v387 = vpop.permute.xlu0 %386
    %390 = vset.pattern.permute.xlu0 0
    %391 = vperm.xlu0 %390, %v109
    %v392 = vpop.permute.xlu0 %391
    %395 = vset.pattern.permute.xlu0 0
    %396 = vperm.xlu0 %395, %v110
    %v397 = vpop.permute.xlu0 %396
    %400 = vset.pattern.permute.xlu0 0
    %401 = vperm.xlu0 %400, %v111
    %v402 = vpop.permute.xlu0 %401
    %405 = vset.pattern.permute.xlu0 0
    %406 = vperm.xlu0 %405, %v112
    %v407 = vpop.permute.xlu0 %406
    %410 = vset.pattern.permute.xlu0 0
    %411 = vperm.xlu0 %410, %v113
    %v412 = vpop.permute.xlu0 %411
    %415 = vset.pattern.permute.xlu0 0
    %416 = vperm.xlu0 %415, %v114
    %v417 = vpop.permute.xlu0 %416
    %420 = vset.pattern.permute.xlu0 0
    %421 = vperm.xlu0 %420, %v115
    %v422 = vpop.permute.xlu0 %421
    %425 = vset.pattern.permute.xlu0 0
    %426 = vperm.xlu0 %425, %v116
    %v427 = vpop.permute.xlu0 %426
    %430 = vset.pattern.permute.xlu0 0
    %431 = vperm.xlu0 %430, %v117
    %v432 = vpop.permute.xlu0 %431
    %435 = vset.pattern.permute.xlu0 0
    %436 = vperm.xlu0 %435, %v118
    %v437 = vpop.permute.xlu0 %436
    %440 = vset.pattern.permute.xlu0 0
    %441 = vperm.xlu0 %440, %v119
    %v442 = vpop.permute.xlu0 %441
    %445 = vset.pattern.permute.xlu0 0
    %446 = vperm.xlu0 %445, %v120
    %v447 = vpop.permute.xlu0 %446
    %450 = vset.pattern.permute.xlu0 0
    %451 = vperm.xlu0 %450, %v121
    %v452 = vpop.permute.xlu0 %451
    %455 = vset.pattern.permute.xlu0 0
    %456 = vperm.xlu0 %455, %v122
    %v457 = vpop.permute.xlu0 %456
    %460 = vset.pattern.permute.xlu0 0
    %461 = vperm.xlu0 %460, %v123
    %v462 = vpop.permute.xlu0 %461
    %465 = vset.pattern.permute.xlu0 0
    %466 = vperm.xlu0 %465, %v124
    %v467 = vpop.permute.xlu0 %466
    %470 = vset.pattern.permute.xlu0 0
    %471 = vperm.xlu0 %470, %v125
    %v472 = vpop.permute.xlu0 %471
    %475 = vset.pattern.permute.xlu0 0
    %476 = vperm.xlu0 %475, %v126
    %v477 = vpop.permute.xlu0 %476
    %480 = vset.pattern.permute.xlu0 0
    %481 = vperm.xlu0 %480, %v127
    %v482 = vpop.permute.xlu0 %481
    %485 = vset.pattern.permute.xlu0 0
    %486 = vperm.xlu0 %485, %v128
    %v487 = vpop.permute.xlu0 %486
    %490 = vset.pattern.permute.xlu0 0
    %491 = vperm.xlu0 %490, %v129
    %v492 = vpop.permute.xlu0 %491
    %495 = vset.pattern.permute.xlu0 0
    %496 = vperm.xlu0 %495, %v130
    %v497 = vpop.permute.xlu0 %496
    %v499 = vadd.f32 %v307, %v342
    %v500 = vadd.f32 %v308, %v347
    %v501 = vadd.f32 %v309, %v352
    %v502 = vadd.f32 %v310, %v357
    %v503 = vadd.f32 %v311, %v362
    %v504 = vadd.f32 %v312, %v367
    %v505 = vadd.f32 %v313, %v372
    %v506 = vadd.f32 %v314, %v377
    %v507 = vadd.f32 %v315, %v382
    %v508 = vadd.f32 %v316, %v387
    %v509 = vadd.f32 %v317, %v392
    %v510 = vadd.f32 %v318, %v397
    %v511 = vadd.f32 %v319, %v402
    %v512 = vadd.f32 %v320, %v407
    %v513 = vadd.f32 %v321, %v412
    %v514 = vadd.f32 %v322, %v417
    %v515 = vadd.f32 %v323, %v422
    %v516 = vadd.f32 %v324, %v427
    %v517 = vadd.f32 %v325, %v432
    %v518 = vadd.f32 %v326, %v437
    %v519 = vadd.f32 %v327, %v442
    %v520 = vadd.f32 %v328, %v447
    %v521 = vadd.f32 %v329, %v452
    %v522 = vadd.f32 %v330, %v457
    %v523 = vadd.f32 %v331, %v462
    %v524 = vadd.f32 %v332, %v467
    %v525 = vadd.f32 %v333, %v472
    %v526 = vadd.f32 %v334, %v477
    %v527 = vadd.f32 %v335, %v482
    %v528 = vadd.f32 %v336, %v487
    %v529 = vadd.f32 %v337, %v492
    %v530 = vadd.f32 %v338, %v497
    %v531 = vmax.f32 %v499, 0.0
    %v532 = vmax.f32 %v500, 0.0
    %v533 = vmax.f32 %v501, 0.0
    %v534 = vmax.f32 %v502, 0.0
    %v535 = vmax.f32 %v503, 0.0
    %v536 = vmax.f32 %v504, 0.0
    %v537 = vmax.f32 %v505, 0.0
    %v538 = vmax.f32 %v506, 0.0
    %v539 = vmax.f32 %v507, 0.0
    %v540 = vmax.f32 %v508, 0.0
    %v541 = vmax.f32 %v509, 0.0
    %v542 = vmax.f32 %v510, 0.0
    %v543 = vmax.f32 %v511, 0.0
    %v544 = vmax.f32 %v512, 0.0
    %v545 = vmax.f32 %v513, 0.0
    %v546 = vmax.f32 %v514, 0.0
    %v547 = vmax.f32 %v515, 0.0
    %v548 = vmax.f32 %v516, 0.0
    %v549 = vmax.f32 %v517, 0.0
    %v550 = vmax.f32 %v518, 0.0
    %v551 = vmax.f32 %v519, 0.0
    %v552 = vmax.f32 %v520, 0.0
    %v553 = vmax.f32 %v521, 0.0
    %v554 = vmax.f32 %v522, 0.0
    %v555 = vmax.f32 %v523, 0.0
    %v556 = vmax.f32 %v524, 0.0
    %v557 = vmax.f32 %v525, 0.0
    %v558 = vmax.f32 %v526, 0.0
    %v559 = vmax.f32 %v527, 0.0
    %v560 = vmax.f32 %v528, 0.0
    %v561 = vmax.f32 %v529, 0.0
    %v562 = vmax.f32 %v530, 0.0
    %v563 = vld [vmem:[%s2] sm:$0xff]
    %v564 = vld [vmem:[%s2 + $0x8] sm:$0xff]
    %v565 = vld [vmem:[%s2 + $0x10] sm:$0xff]
    %v566 = vld [vmem:[%s2 + $0x18] sm:$0xff]
    %v567 = vld [vmem:[%s2 + $0x20] sm:$0xff]
    %v568 = vld [vmem:[%s2 + $0x28] sm:$0xff]
    %v569 = vld [vmem:[%s2 + $0x30] sm:$0xff]
    %v570 = vld [vmem:[%s2 + $0x38] sm:$0xff]
    %v571 = vld [vmem:[%s2 + $0x40] sm:$0xff]
    %v572 = vld [vmem:[%s2 + $0x48] sm:$0xff]
    %v573 = vld [vmem:[%s2 + $0x50] sm:$0xff]
    %v574 = vld [vmem:[%s2 + $0x58] sm:$0xff]
    %v575 = vld [vmem:[%s2 + $0x60] sm:$0xff]
    %v576 = vld [vmem:[%s2 + $0x68] sm:$0xff]
    %v577 = vld [vmem:[%s2 + $0x70] sm:$0xff]
    %v578 = vld [vmem:[%s2 + $0x78] sm:$0xff]
    %580 = vset.pattern.permute.xlu0 0
    %581 = vperm.xlu0 %580, %v131
    %v582 = vpop.permute.xlu0 %581
    %585 = vset.pattern.permute.xlu0 0
    %586 = vperm.xlu0 %585, %v132
    %v587 = vpop.permute.xlu0 %586
    %590 = vset.pattern.permute.xlu0 0
    %591 = vperm.xlu0 %590, %v133
    %v592 = vpop.permute.xlu0 %591
    %595 = vset.pattern.permute.xlu0 0
    %596 = vperm.xlu0 %595, %v134
    %v597 = vpop.permute.xlu0 %596
    %600 = vset.pattern.permute.xlu0 0
    %601 = vperm.xlu0 %600, %v135
    %v602 = vpop.permute.xlu0 %601
    %605 = vset.pattern.permute.xlu0 0
    %606 = vperm.xlu0 %605, %v136
    %v607 = vpop.permute.xlu0 %606
    %610 = vset.pattern.permute.xlu0 0
    %611 = vperm.xlu0 %610, %v137
    %v612 = vpop.permute.xlu0 %611
    %615 = vset.pattern.permute.xlu0 0
    %616 = vperm.xlu0 %615, %v138
    %v617 = vpop.permute.xlu0 %616
    %619 = vmatprep.subr.mxu0 0.0
    %620 = vmatpush1.msra.mxu0 %v531
    %621 = vmatprep.subr.mxu0 0.0
    %622 = vmatpush1.msra.mxu0 %v532
    %623 = vmatprep.subr.mxu0 0.0
    %624 = vmatpush1.msra.mxu0 %v533
    %625 = vmatprep.subr.mxu0 0.0
    %626 = vmatpush1.msra.mxu0 %v534
    %627 = vmatprep.subr.mxu0 0.0
    %628 = vmatpush1.msra.mxu0 %v535
    %629 = vmatprep.subr.mxu0 0.0
    %630 = vmatpush1.msra.mxu0 %v536
    %631 = vmatprep.subr.mxu0 0.0
    %632 = vmatpush1.msra.mxu0 %v537
    %633 = vmatprep.subr.mxu0 0.0
    %634 = vmatpush1.msra.mxu0 %v538
    %635 = vmatprep.subr.mxu0 0.0
    %636 = vmatpush1.msra.mxu0 %v539
    %637 = vmatprep.subr.mxu0 0.0
    %638 = vmatpush1.msra.mxu0 %v540
    %639 = vmatprep.subr.mxu0 0.0
    %640 = vmatpush1.msra.mxu0 %v541
    %641 = vmatprep.subr.mxu0 0.0
    %642 = vmatpush1.msra.mxu0 %v542
    %643 = vmatprep.subr.mxu0 0.0
    %644 = vmatpush1.msra.mxu0 %v543
    %645 = vmatprep.subr.mxu0 0.0
    %646 = vmatpush1.msra.mxu0 %v544
    %647 = vmatprep.subr.mxu0 0.0
    %648 = vmatpush1.msra.mxu0 %v545
    %649 = vmatprep.subr.mxu0 0.0
    %650 = vmatpush1.msra.mxu0 %v546
    %651 = vmatprep.subr.mxu0 0.0
    %652 = vmatpush1.msra.mxu0 %v547
    %653 = vmatprep.subr.mxu0 0.0
    %654 = vmatpush1.msra.mxu0 %v548
    %655 = vmatprep.subr.mxu0 0.0
    %656 = vmatpush1.msra.mxu0 %v549
    %657 = vmatprep.subr.mxu0 0.0
    %658 = vmatpush1.msra.mxu0 %v550
    %659 = vmatprep.subr.mxu0 0.0
    %660 = vmatpush1.msra.mxu0 %v551
    %661 = vmatprep.subr.mxu0 0.0
    %662 = vmatpush1.msra.mxu0 %v552
    %663 = vmatprep.subr.mxu0 0.0
    %664 = vmatpush1.msra.mxu0 %v553
    %665 = vmatprep.subr.mxu0 0.0
    %666 = vmatpush1.msra.mxu0 %v554
    %667 = vmatprep.subr.mxu0 0.0
    %668 = vmatpush1.msra.mxu0 %v555
    %669 = vmatprep.subr.mxu0 0.0
    %670 = vmatpush1.msra.mxu0 %v556
    %671 = vmatprep.subr.mxu0 0.0
    %672 = vmatpush1.msra.mxu0 %v557
    %673 = vmatprep.subr.mxu0 0.0
    %674 = vmatpush1.msra.mxu0 %v558
    %675 = vmatprep.subr.mxu0 0.0
    %676 = vmatpush1.msra.mxu0 %v559
    %677 = vmatprep.subr.mxu0 0.0
    %678 = vmatpush1.msra.mxu0 %v560
    %679 = vmatprep.subr.mxu0 0.0
    %680 = vmatpush1.msra.mxu0 %v561
    %681 = vmatprep.subr.mxu0 0.0
    %682 = vmatpush1.msra.mxu0 %v562
    %683 = vmatprep.mubr.f32.mxu0 %v564
    %684 = vmatmul.mubr.f32.gmra.mrb[0].mxu0 %v563
    %v685 = vpop.f32.mrb[0].mxu0
    %v686 = vadd.f32 %v582, %v685
    %v687 = vpop.f32.mrb[0].mxu0
    %688 = vmatprep.mubr.f32.mxu0 %v566
    %689 = vmatmul.mubr.f32.gmra.mrb[0].mxu0 %v565
    %v690 = vpop.f32.mrb[0].mxu0
    %v691 = vadd.f32 %v587, %v690
    %v692 = vpop.f32.mrb[0].mxu0
    %693 = vmatprep.mubr.f32.mxu0 %v568
    %694 = vmatmul.mubr.f32.gmra.mrb[0].mxu0 %v567
    %v695 = vpop.f32.mrb[0].mxu0
    %v696 = vadd.f32 %v592, %v695
    %v697 = vpop.f32.mrb[0].mxu0
    %698 = vmatprep.mubr.f32.mxu0 %v570
    %699 = vmatmul.mubr.f32.gmra.mrb[0].mxu0 %v569
    %v700 = vpop.f32.mrb[0].mxu0
    %v701 = vadd.f32 %v597, %v700
    %v702 = vpop.f32.mrb[0].mxu0
    %703 = vmatprep.mubr.f32.mxu0 %v572
    %704 = vmatmul.mubr.f32.gmra.mrb[0].mxu0 %v571
    %v705 = vpop.f32.mrb[0].mxu0
    %v706 = vadd.f32 %v602, %v705
    %v707 = vpop.f32.mrb[0].mxu0
    %708 = vmatprep.mubr.f32.mxu0 %v574
    %709 = vmatmul.mubr.f32.gmra.mrb[0].mxu0 %v573
    %v710 = vpop.f32.mrb[0].mxu0
    %v711 = vadd.f32 %v607, %v710
    %v712 = vpop.f32.mrb[0].mxu0
    %713 = vmatprep.mubr.f32.mxu0 %v576
    %714 = vmatmul.mubr.f32.gmra.mrb[0].mxu0 %v575
    %v715 = vpop.f32.mrb[0].mxu0
    %v716 = vadd.f32 %v612, %v715
    %v717 = vpop.f32.mrb[0].mxu0
    %718 = vmatprep.mubr.f32.mxu0 %v578
    %719 = vmatmul.mubr.f32.gmra.mrb[0].mxu0 %v577
    %v720 = vpop.f32.mrb[0].mxu0
    %v721 = vadd.f32 %v617, %v720
    %v722 = vpop.f32.mrb[0].mxu0
    %723 = vdwg.mxu0
    %v724 = vmax.f32 %v686, 0.0
    %v725 = vmax.f32 %v691, 0.0
    %v726 = vmax.f32 %v696, 0.0
    %v727 = vmax.f32 %v701, 0.0
    %v728 = vmax.f32 %v706, 0.0
    %v729 = vmax.f32 %v711, 0.0
    %v730 = vmax.f32 %v716, 0.0
    %v731 = vmax.f32 %v721, 0.0
    %733 = vset.pattern.permute.xlu0 0
    %734 = vperm.xlu0 %733, %v139
    %v735 = vpop.permute.xlu0 %734
    %738 = vset.pattern.permute.xlu0 0
    %739 = vperm.xlu0 %738, %v140
    %v740 = vpop.permute.xlu0 %739
    %743 = vset.pattern.permute.xlu0 0
    %744 = vperm.xlu0 %743, %v141
    %v745 = vpop.permute.xlu0 %744
    %748 = vset.pattern.permute.xlu0 0
    %749 = vperm.xlu0 %748, %v142
    %v750 = vpop.permute.xlu0 %749
    %753 = vset.pattern.permute.xlu0 0
    %754 = vperm.xlu0 %753, %v143
    %v755 = vpop.permute.xlu0 %754
    %758 = vset.pattern.permute.xlu0 0
    %759 = vperm.xlu0 %758, %v144
    %v760 = vpop.permute.xlu0 %759
    %763 = vset.pattern.permute.xlu0 0
    %764 = vperm.xlu0 %763, %v145
    %v765 = vpop.permute.xlu0 %764
    %768 = vset.pattern.permute.xlu0 0
    %769 = vperm.xlu0 %768, %v146
    %v770 = vpop.permute.xlu0 %769
    %v772 = vmul.f32 %v724, %v735
    %v773 = vmul.f32 %v725, %v740
    %v774 = vmul.f32 %v726, %v745
    %v775 = vmul.f32 %v727, %v750
    %v776 = vmul.f32 %v728, %v755
    %v777 = vmul.f32 %v729, %v760
    %v778 = vmul.f32 %v730, %v765
    %v779 = vmul.f32 %v731, %v770
    %v780 = vadd.f32 %v772, %v773
    %v781 = vadd.f32 %v780, %v774
    %v782 = vadd.f32 %v781, %v775
    %v783 = vadd.f32 %v782, %v776
    %v784 = vadd.f32 %v783, %v777
    %v785 = vadd.f32 %v784, %v778
    %v786 = vadd.f32 %v785, %v779
    %v787 = vrot.slane %v786, 4
    %v788 = vadd.f32 %v786, %v787
    %v789 = vrot.slane %v788, 2
    %v790 = vadd.f32 %v788, %v789
    %v791 = vrot.slane %v790, 1
    %v792 = vadd.f32 %v790, %v791
    %v793 = vld [vmem:[%s3] sm:$0xff]
    %v794 = vld [vmem:[%s3 + $0x8] sm:$0xff]
    %v795 = vld [vmem:[%s3 + $0x10] sm:$0xff]
    %v796 = vld [vmem:[%s3 + $0x18] sm:$0xff]
    %v797 = vld [vmem:[%s3 + $0x20] sm:$0xff]
    %v798 = vld [vmem:[%s3 + $0x28] sm:$0xff]
    %v799 = vld [vmem:[%s3 + $0x30] sm:$0xff]
    %v800 = vld [vmem:[%s3 + $0x38] sm:$0xff]
    %v801 = vld [vmem:[%s3 + $0x40] sm:$0xff]
    %v802 = vld [vmem:[%s3 + $0x48] sm:$0xff]
    %v803 = vld [vmem:[%s3 + $0x50] sm:$0xff]
    %v804 = vld [vmem:[%s3 + $0x58] sm:$0xff]
    %v805 = vld [vmem:[%s3 + $0x60] sm:$0xff]
    %v806 = vld [vmem:[%s3 + $0x68] sm:$0xff]
    %v807 = vld [vmem:[%s3 + $0x70] sm:$0xff]
    %v808 = vld [vmem:[%s3 + $0x78] sm:$0xff]
    %v809 = vld [vmem:[%s3 + $0x80] sm:$0xff]
    %v810 = vld [vmem:[%s3 + $0x88] sm:$0xff]
    %v811 = vld [vmem:[%s3 + $0x90] sm:$0xff]
    %v812 = vld [vmem:[%s3 + $0x98] sm:$0xff]
    %v813 = vld [vmem:[%s3 + $0xa0] sm:$0xff]
    %v814 = vld [vmem:[%s3 + $0xa8] sm:$0xff]
    %v815 = vld [vmem:[%s3 + $0xb0] sm:$0xff]
    %v816 = vld [vmem:[%s3 + $0xb8] sm:$0xff]
    %v817 = vld [vmem:[%s3 + $0xc0] sm:$0xff]
    %v818 = vld [vmem:[%s3 + $0xc8] sm:$0xff]
    %v819 = vld [vmem:[%s3 + $0xd0] sm:$0xff]
    %v820 = vld [vmem:[%s3 + $0xd8] sm:$0xff]
    %v821 = vld [vmem:[%s3 + $0xe0] sm:$0xff]
    %v822 = vld [vmem:[%s3 + $0xe8] sm:$0xff]
    %v823 = vld [vmem:[%s3 + $0xf0] sm:$0xff]
    %v824 = vld [vmem:[%s3 + $0xf8] sm:$0xff]
    %v825 = vmul.f32 %v793, %v792
    %v826 = vmul.f32 %v794, %v792
    %v827 = vmul.f32 %v795, %v792
    %v828 = vmul.f32 %v796, %v792
    %v829 = vmul.f32 %v797, %v792
    %v830 = vmul.f32 %v798, %v792
    %v831 = vmul.f32 %v799, %v792
    %v832 = vmul.f32 %v800, %v792
    %v833 = vmul.f32 %v801, %v792
    %v834 = vmul.f32 %v802, %v792
    %v835 = vmul.f32 %v803, %v792
    %v836 = vmul.f32 %v804, %v792
    %v837 = vmul.f32 %v805, %v792
    %v838 = vmul.f32 %v806, %v792
    %v839 = vmul.f32 %v807, %v792
    %v840 = vmul.f32 %v808, %v792
    %v841 = vmul.f32 %v809, %v792
    %v842 = vmul.f32 %v810, %v792
    %v843 = vmul.f32 %v811, %v792
    %v844 = vmul.f32 %v812, %v792
    %v845 = vmul.f32 %v813, %v792
    %v846 = vmul.f32 %v814, %v792
    %v847 = vmul.f32 %v815, %v792
    %v848 = vmul.f32 %v816, %v792
    %v849 = vmul.f32 %v817, %v792
    %v850 = vmul.f32 %v818, %v792
    %v851 = vmul.f32 %v819, %v792
    %v852 = vmul.f32 %v820, %v792
    %v853 = vmul.f32 %v821, %v792
    %v854 = vmul.f32 %v822, %v792
    %v855 = vmul.f32 %v823, %v792
    %v856 = vmul.f32 %v824, %v792
    %v857 = vld [vmem:[#allocation2] sm:$0xff]
    %v858 = vld [vmem:[#allocation2 + $0x8] sm:$0xff]
    %v859 = vld [vmem:[#allocation2 + $0x10] sm:$0xff]
    %v860 = vld [vmem:[#allocation2 + $0x18] sm:$0xff]
    %v861 = vld [vmem:[#allocation2 + $0x20] sm:$0xff]
    %v862 = vld [vmem:[#allocation2 + $0x28] sm:$0xff]
    %v863 = vld [vmem:[#allocation2 + $0x30] sm:$0xff]
    %v864 = vld [vmem:[#allocation2 + $0x38] sm:$0xff]
    %v865 = vld [vmem:[#allocation2 + $0x40] sm:$0xff]
    %v866 = vld [vmem:[#allocation2 + $0x48] sm:$0xff]
    %v867 = vld [vmem:[#allocation2 + $0x50] sm:$0xff]
    %v868 = vld [vmem:[#allocation2 + $0x58] sm:$0xff]
    %v869 = vld [vmem:[#allocation2 + $0x60] sm:$0xff]
    %v870 = vld [vmem:[#allocation2 + $0x68] sm:$0xff]
    %v871 = vld [vmem:[#allocation2 + $0x70] sm:$0xff]
    %v872 = vld [vmem:[#allocation2 + $0x78] sm:$0xff]
    %873 = vmatprep.subr.mxu0 0.0
    %874 = vmatpush1.msra.mxu0 %v857
    %875 = vmatprep.subr.mxu0 0.0
    %876 = vmatpush1.msra.mxu0 %v858
    %877 = vmatprep.subr.mxu0 0.0
    %878 = vmatpush1.msra.mxu0 %v859
    %879 = vmatprep.subr.mxu0 0.0
    %880 = vmatpush1.msra.mxu0 %v860
    %881 = vmatprep.subr.mxu0 0.0
    %882 = vmatpush1.msra.mxu0 %v861
    %883 = vmatprep.subr.mxu0 0.0
    %884 = vmatpush1.msra.mxu0 %v862
    %885 = vmatprep.subr.mxu0 0.0
    %886 = vmatpush1.msra.mxu0 %v863
    %887 = vmatprep.subr.mxu0 0.0
    %888 = vmatpush1.msra.mxu0 %v864
    %889 = vmatprep.subr.mxu0 0.0
    %890 = vmatpush1.msra.mxu0 %v865
    %891 = vmatprep.subr.mxu0 0.0
    %892 = vmatpush1.msra.mxu0 %v866
    %893 = vmatprep.subr.mxu0 0.0
    %894 = vmatpush1.msra.mxu0 %v867
    %895 = vmatprep.subr.mxu0 0.0
    %896 = vmatpush1.msra.mxu0 %v868
    %897 = vmatprep.subr.mxu0 0.0
    %898 = vmatpush1.msra.mxu0 %v869
    %899 = vmatprep.subr.mxu0 0.0
    %900 = vmatpush1.msra.mxu0 %v870
    %901 = vmatprep.subr.mxu0 0.0
    %902 = vmatpush1.msra.mxu0 %v871
    %903 = vmatprep.subr.mxu0 0.0
    %904 = vmatpush1.msra.mxu0 %v872
    %905 = vmatprep.subr.mxu0 0.0
    %906 = vmatpush1.msra.mxu0 0.0
    %907 = vmatprep.subr.mxu0 0.0
    %908 = vmatpush1.msra.mxu0 0.0
    %909 = vmatprep.subr.mxu0 0.0
    %910 = vmatpush1.msra.mxu0 0.0
    %911 = vmatprep.subr.mxu0 0.0
    %912 = vmatpush1.msra.mxu0 0.0
    %913 = vmatprep.subr.mxu0 0.0
    %914 = vmatpush1.msra.mxu0 0.0
    %915 = vmatprep.subr.mxu0 0.0
    %916 = vmatpush1.msra.mxu0 0.0
    %917 = vmatprep.subr.mxu0 0.0
    %918 = vmatpush1.msra.mxu0 0.0
    %919 = vmatprep.subr.mxu0 0.0
    %920 = vmatpush1.msra.mxu0 0.0
    %921 = vmatprep.subr.mxu0 0.0
    %922 = vmatpush1.msra.mxu0 0.0
    %923 = vmatprep.subr.mxu0 0.0
    %924 = vmatpush1.msra.mxu0 0.0
    %925 = vmatprep.subr.mxu0 0.0
    %926 = vmatpush1.msra.mxu0 0.0
    %927 = vmatprep.subr.mxu0 0.0
    %928 = vmatpush1.msra.mxu0 0.0
    %929 = vmatprep.subr.mxu0 0.0
    %930 = vmatpush1.msra.mxu0 0.0
    %931 = vmatprep.subr.mxu0 0.0
    %932 = vmatpush1.msra.mxu0 0.0
    %933 = vmatprep.subr.mxu0 0.0
    %934 = vmatpush1.msra.mxu0 0.0
    %935 = vmatprep.subr.mxu0 0.0
    %936 = vmatpush1.msra.mxu0 0.0
    %937 = vmatprep.mubr.f32.mxu0 0.0
    %938 = vmatmul.mubr.f32.gmra.mrb[0].mxu0 %v825
    %v939 = vpop.f32.mrb[0].mxu0
    %v940 = vadd.f32 0.0, %v939
    %v941 = vpop.f32.mrb[0].mxu0
    %942 = vmatprep.mubr.f32.mxu0 0.0
    %943 = vmatmul.mubr.f32.gmra.mrb[0].mxu0 %v826
    %v944 = vpop.f32.mrb[0].mxu0
    %v945 = vadd.f32 0.0, %v944
    %v946 = vpop.f32.mrb[0].mxu0
    %947 = vmatprep.mubr.f32.mxu0 0.0
    %948 = vmatmul.mubr.f32.gmra.mrb[0].mxu0 %v827
    %v949 = vpop.f32.mrb[0].mxu0
    %v950 = vadd.f32 0.0, %v949
    %v951 = vpop.f32.mrb[0].mxu0
    %952 = vmatprep.mubr.f32.mxu0 0.0
    %953 = vmatmul.mubr.f32.gmra.mrb[0].mxu0 %v828
    %v954 = vpop.f32.mrb[0].mxu0
    %v955 = vadd.f32 0.0, %v954
    %v956 = vpop.f32.mrb[0].mxu0
    %957 = vmatprep.mubr.f32.mxu0 0.0
    %958 = vmatmul.mubr.f32.gmra.mrb[0].mxu0 %v829
    %v959 = vpop.f32.mrb[0].mxu0
    %v960 = vadd.f32 0.0, %v959
    %v961 = vpop.f32.mrb[0].mxu0
    %962 = vmatprep.mubr.f32.mxu0 0.0
    %963 = vmatmul.mubr.f32.gmra.mrb[0].mxu0 %v830
    %v964 = vpop.f32.mrb[0].mxu0
    %v965 = vadd.f32 0.0, %v964
    %v966 = vpop.f32.mrb[0].mxu0
    %967 = vmatprep.mubr.f32.mxu0 0.0
    %968 = vmatmul.mubr.f32.gmra.mrb[0].mxu0 %v831
    %v969 = vpop.f32.mrb[0].mxu0
    %v970 = vadd.f32 0.0, %v969
    %v971 = vpop.f32.mrb[0].mxu0
    %972 = vmatprep.mubr.f32.mxu0 0.0
    %973 = vmatmul.mubr.f32.gmra.mrb[0].mxu0 %v832
    %v974 = vpop.f32.mrb[0].mxu0
    %v975 = vadd.f32 0.0, %v974
    %v976 = vpop.f32.mrb[0].mxu0
    %977 = vmatprep.mubr.f32.mxu0 0.0
    %978 = vmatmul.mubr.f32.gmra.mrb[0].mxu0 %v833
    %v979 = vpop.f32.mrb[0].mxu0
    %v980 = vadd.f32 0.0, %v979
    %v981 = vpop.f32.mrb[0].mxu0
    %982 = vmatprep.mubr.f32.mxu0 0.0
    %983 = vmatmul.mubr.f32.gmra.mrb[0].mxu0 %v834
    %v984 = vpop.f32.mrb[0].mxu0
    %v985 = vadd.f32 0.0, %v984
    %v986 = vpop.f32.mrb[0].mxu0
    %987 = vmatprep.mubr.f32.mxu0 0.0
    %988 = vmatmul.mubr.f32.gmra.mrb[0].mxu0 %v835
    %v989 = vpop.f32.mrb[0].mxu0
    %v990 = vadd.f32 0.0, %v989
    %v991 = vpop.f32.mrb[0].mxu0
    %992 = vmatprep.mubr.f32.mxu0 0.0
    %993 = vmatmul.mubr.f32.gmra.mrb[0].mxu0 %v836
    %v994 = vpop.f32.mrb[0].mxu0
    %v995 = vadd.f32 0.0, %v994
    %v996 = vpop.f32.mrb[0].mxu0
    %997 = vmatprep.mubr.f32.mxu0 0.0
    %998 = vmatmul.mubr.f32.gmra.mrb[0].mxu0 %v837
    %v999 = vpop.f32.mrb[0].mxu0
    %v1000 = vadd.f32 0.0, %v999
    %v1001 = vpop.f32.mrb[0].mxu0
    %1002 = vmatprep.mubr.f32.mxu0 0.0
    %1003 = vmatmul.mubr.f32.gmra.mrb[0].mxu0 %v838
    %v1004 = vpop.f32.mrb[0].mxu0
    %v1005 = vadd.f32 0.0, %v1004
    %v1006 = vpop.f32.mrb[0].mxu0
    %1007 = vmatprep.mubr.f32.mxu0 0.0
    %1008 = vmatmul.mubr.f32.gmra.mrb[0].mxu0 %v839
    %v1009 = vpop.f32.mrb[0].mxu0
    %v1010 = vadd.f32 0.0, %v1009
    %v1011 = vpop.f32.mrb[0].mxu0
    %1012 = vmatprep.mubr.f32.mxu0 0.0
    %1013 = vmatmul.mubr.f32.gmra.mrb[0].mxu0 %v840
    %v1014 = vpop.f32.mrb[0].mxu0
    %v1015 = vadd.f32 0.0, %v1014
    %v1016 = vpop.f32.mrb[0].mxu0
    %1017 = vmatprep.mubr.f32.mxu0 0.0
    %1018 = vmatmul.mubr.f32.gmra.mrb[0].mxu0 %v841
    %v1019 = vpop.f32.mrb[0].mxu0
    %v1020 = vadd.f32 0.0, %v1019
    %v1021 = vpop.f32.mrb[0].mxu0
    %1022 = vmatprep.mubr.f32.mxu0 0.0
    %1023 = vmatmul.mubr.f32.gmra.mrb[0].mxu0 %v842
    %v1024 = vpop.f32.mrb[0].mxu0
    %v1025 = vadd.f32 0.0, %v1024
    %v1026 = vpop.f32.mrb[0].mxu0
    %1027 = vmatprep.mubr.f32.mxu0 0.0
    %1028 = vmatmul.mubr.f32.gmra.mrb[0].mxu0 %v843
    %v1029 = vpop.f32.mrb[0].mxu0
    %v1030 = vadd.f32 0.0, %v1029
    %v1031 = vpop.f32.mrb[0].mxu0
    %1032 = vmatprep.mubr.f32.mxu0 0.0
    %1033 = vmatmul.mubr.f32.gmra.mrb[0].mxu0 %v844
    %v1034 = vpop.f32.mrb[0].mxu0
    %v1035 = vadd.f32 0.0, %v1034
    %v1036 = vpop.f32.mrb[0].mxu0
    %1037 = vmatprep.mubr.f32.mxu0 0.0
    %1038 = vmatmul.mubr.f32.gmra.mrb[0].mxu0 %v845
    %v1039 = vpop.f32.mrb[0].mxu0
    %v1040 = vadd.f32 0.0, %v1039
    %v1041 = vpop.f32.mrb[0].mxu0
    %1042 = vmatprep.mubr.f32.mxu0 0.0
    %1043 = vmatmul.mubr.f32.gmra.mrb[0].mxu0 %v846
    %v1044 = vpop.f32.mrb[0].mxu0
    %v1045 = vadd.f32 0.0, %v1044
    %v1046 = vpop.f32.mrb[0].mxu0
    %1047 = vmatprep.mubr.f32.mxu0 0.0
    %1048 = vmatmul.mubr.f32.gmra.mrb[0].mxu0 %v847
    %v1049 = vpop.f32.mrb[0].mxu0
    %v1050 = vadd.f32 0.0, %v1049
    %v1051 = vpop.f32.mrb[0].mxu0
    %1052 = vmatprep.mubr.f32.mxu0 0.0
    %1053 = vmatmul.mubr.f32.gmra.mrb[0].mxu0 %v848
    %v1054 = vpop.f32.mrb[0].mxu0
    %v1055 = vadd.f32 0.0, %v1054
    %v1056 = vpop.f32.mrb[0].mxu0
    %1057 = vmatprep.mubr.f32.mxu0 0.0
    %1058 = vmatmul.mubr.f32.gmra.mrb[0].mxu0 %v849
    %v1059 = vpop.f32.mrb[0].mxu0
    %v1060 = vadd.f32 0.0, %v1059
    %v1061 = vpop.f32.mrb[0].mxu0
    %1062 = vmatprep.mubr.f32.mxu0 0.0
    %1063 = vmatmul.mubr.f32.gmra.mrb[0].mxu0 %v850
    %v1064 = vpop.f32.mrb[0].mxu0
    %v1065 = vadd.f32 0.0, %v1064
    %v1066 = vpop.f32.mrb[0].mxu0
    %1067 = vmatprep.mubr.f32.mxu0 0.0
    %1068 = vmatmul.mubr.f32.gmra.mrb[0].mxu0 %v851
    %v1069 = vpop.f32.mrb[0].mxu0
    %v1070 = vadd.f32 0.0, %v1069
    %v1071 = vpop.f32.mrb[0].mxu0
    %1072 = vmatprep.mubr.f32.mxu0 0.0
    %1073 = vmatmul.mubr.f32.gmra.mrb[0].mxu0 %v852
    %v1074 = vpop.f32.mrb[0].mxu0
    %v1075 = vadd.f32 0.0, %v1074
    %v1076 = vpop.f32.mrb[0].mxu0
    %1077 = vmatprep.mubr.f32.mxu0 0.0
    %1078 = vmatmul.mubr.f32.gmra.mrb[0].mxu0 %v853
    %v1079 = vpop.f32.mrb[0].mxu0
    %v1080 = vadd.f32 0.0, %v1079
    %v1081 = vpop.f32.mrb[0].mxu0
    %1082 = vmatprep.mubr.f32.mxu0 0.0
    %1083 = vmatmul.mubr.f32.gmra.mrb[0].mxu0 %v854
    %v1084 = vpop.f32.mrb[0].mxu0
    %v1085 = vadd.f32 0.0, %v1084
    %v1086 = vpop.f32.mrb[0].mxu0
    %1087 = vmatprep.mubr.f32.mxu0 0.0
    %1088 = vmatmul.mubr.f32.gmra.mrb[0].mxu0 %v855
    %v1089 = vpop.f32.mrb[0].mxu0
    %v1090 = vadd.f32 0.0, %v1089
    %v1091 = vpop.f32.mrb[0].mxu0
    %1092 = vmatprep.mubr.f32.mxu0 0.0
    %1093 = vmatmul.mubr.f32.gmra.mrb[0].mxu0 %v856
    %v1094 = vpop.f32.mrb[0].mxu0
    %v1095 = vadd.f32 0.0, %v1094
    %v1096 = vpop.f32.mrb[0].mxu0
    %1097 = vdwg.mxu0
    %1098 = vst [vmem:[#allocation5] sm:$0xff] %v940
    %1099 = vst [vmem:[#allocation5 + $0x8] sm:$0xff] %v945
    %1100 = vst [vmem:[#allocation5 + $0x10] sm:$0xff] %v950
    %1101 = vst [vmem:[#allocation5 + $0x18] sm:$0xff] %v955
    %1102 = vst [vmem:[#allocation5 + $0x20] sm:$0xff] %v960
    %1103 = vst [vmem:[#allocation5 + $0x28] sm:$0xff] %v965
    %1104 = vst [vmem:[#allocation5 + $0x30] sm:$0xff] %v970
    %1105 = vst [vmem:[#allocation5 + $0x38] sm:$0xff] %v975
    %1106 = vst [vmem:[#allocation5 + $0x40] sm:$0xff] %v980
    %1107 = vst [vmem:[#allocation5 + $0x48] sm:$0xff] %v985
    %1108 = vst [vmem:[#allocation5 + $0x50] sm:$0xff] %v990
    %1109 = vst [vmem:[#allocation5 + $0x58] sm:$0xff] %v995
    %1110 = vst [vmem:[#allocation5 + $0x60] sm:$0xff] %v1000
    %1111 = vst [vmem:[#allocation5 + $0x68] sm:$0xff] %v1005
    %1112 = vst [vmem:[#allocation5 + $0x70] sm:$0xff] %v1010
    %1113 = vst [vmem:[#allocation5 + $0x78] sm:$0xff] %v1015
    %1114 = vst [vmem:[#allocation5 + $0x80] sm:$0xff] %v1020
    %1115 = vst [vmem:[#allocation5 + $0x88] sm:$0xff] %v1025
    %1116 = vst [vmem:[#allocation5 + $0x90] sm:$0xff] %v1030
    %1117 = vst [vmem:[#allocation5 + $0x98] sm:$0xff] %v1035
    %1118 = vst [vmem:[#allocation5 + $0xa0] sm:$0xff] %v1040
    %1119 = vst [vmem:[#allocation5 + $0xa8] sm:$0xff] %v1045
    %1120 = vst [vmem:[#allocation5 + $0xb0] sm:$0xff] %v1050
    %1121 = vst [vmem:[#allocation5 + $0xb8] sm:$0xff] %v1055
    %1122 = vst [vmem:[#allocation5 + $0xc0] sm:$0xff] %v1060
    %1123 = vst [vmem:[#allocation5 + $0xc8] sm:$0xff] %v1065
    %1124 = vst [vmem:[#allocation5 + $0xd0] sm:$0xff] %v1070
    %1125 = vst [vmem:[#allocation5 + $0xd8] sm:$0xff] %v1075
    %1126 = vst [vmem:[#allocation5 + $0xe0] sm:$0xff] %v1080
    %1127 = vst [vmem:[#allocation5 + $0xe8] sm:$0xff] %v1085
    %1128 = vst [vmem:[#allocation5 + $0xf0] sm:$0xff] %v1090
    %1129 = vst [vmem:[#allocation5 + $0xf8] sm:$0xff] %v1095
    // Predicated region
    $region26: #{tpu_custom_call.1} parent=1 // pred_check
      _
    $region27: #{tpu_custom_call.1} parent=1 // pred_check_branch
      %1131 = sbr.rel (0) target = $region29
    $region28: #{tpu_custom_call.1} parent=1 // pred_region
      %s1133 = ssub.s32 4096, 4096
      %1134 = vsyncadd [#allocation4], %s1133
      %s1135 = sshll.u32 [#allocation5], 4
      %s1136 = int_to_ptr.vmem [resolvable:$true] %s1135
      %1141 = dma.vmem_to_hbm [thread:$0]  %s1136, 4096, %s5, [#allocation4], 128, 128, 8
    $region29: #{tpu_custom_call.1} parent=1 // pred_fallthru
      _
    // Predicated region
    $region30: #{tpu_custom_call.1} parent=1 // pred_check
      _
    $region31: #{tpu_custom_call.1} parent=1 // pred_check_branch
      %1143 = sbr.rel (0) target = $region33
    $region32: #{tpu_custom_call.1} parent=1 // pred_region
      %1144 = dma.done [#allocation4], 4096
    $region33: #{tpu_custom_call.1} parent=1 // pred_fallthru
      _
    %1145 = vsyncpa [#allocation3], 1
    %1146 = vsyncpa [#allocation4], 1

</llo_original>
